<compile_context>
chip_gen: v5e
topology: v5e:2x2
jax: 0.10.0
libtpu: 0.0.40
codegen_flags: <defaults>
</compile_context>

<pallas_src>
import math
import jax
import jax.numpy as jnp
from jax import lax
from jax.experimental import pallas as pl
from jax.experimental.pallas import tpu as pltpu


# ---------------------------------------------------------------------------
# Kernel
# ---------------------------------------------------------------------------
def _actor_critic_kernel(
    dist_ref,          # SMEM (4,): [1/var1, 1/var2, logp_const, critic.4 bias]
    x_ref,             # VMEM [TB, 2+S] f32 : lanes 0,1 = action, lanes 2: = state
    wa_ref,            # VMEM [2+S, 128] bf16 : layer A (common.0 | critic.0)
    ws_ref,            # VMEM [3, 128, 128] bf16 : layers B, C, D
    bs_ref,            # VMEM [5, 128] f32 : biases A..D + critic.4 weight row
    out_ref,           # VMEM [TB, 128] f32 : col0/1 mean, col2 logp, col3 value
):
    f32 = jnp.float32
    bf16 = jnp.bfloat16
    col = lax.broadcasted_iota(jnp.int32, (1, 128), 1)

    x = x_ref[...]                                   # f32, keep full precision for logp
    xb = x.astype(bf16)

    # Layer A: cols 0:64 actor common.0 (ReLU), cols 64:76 critic.0 (Tanh),
    # cols 76:128 zero padding (tanh(0)=0).
    ta = jnp.dot(xb, wa_ref[...], preferred_element_type=f32) + bs_ref[0:1, :]
    ha = jnp.where(col < 64, jnp.maximum(ta, 0.0), jnp.tanh(ta))

    # Layer B: cols 0:32 actor common.2 (ReLU), cols 32:44 critic.2 (Tanh).
    tb = jnp.dot(ha.astype(bf16), ws_ref[0], preferred_element_type=f32) + bs_ref[1:2, :]
    hb = jnp.where(col < 32, jnp.maximum(tb, 0.0), jnp.tanh(tb))

    # Critic value: 12-wide critic.4 dot as lane-masked multiply + XLU reduction.
    # bs_ref row 4 holds critic.4 weights in lanes 32:44, zero elsewhere.
    value = jnp.sum(hb * bs_ref[4:5, :], axis=-1, keepdims=True) + dist_ref[3]

    # Layer C: cols 0:64 branch1.0, cols 64:128 branch2.0 (all ReLU).
    tc = jnp.dot(hb.astype(bf16), ws_ref[1], preferred_element_type=f32) + bs_ref[2:3, :]
    hc = jnp.maximum(tc, 0.0)

    # Layer D: col0 = branch1.2 (Tanh), col1 = branch2.2 (Sigmoid).
    # Single EUP tanh pass: sigmoid(x) = 0.5*(1 + tanh(x/2)).
    td = jnp.dot(hc.astype(bf16), ws_ref[2], preferred_element_type=f32) + bs_ref[3:4, :]
    t = jnp.tanh(td * jnp.where(col == 1, 0.5, 1.0))
    act = jnp.where(col == 1, 0.5 + 0.5 * t, t)      # cols >=2 stay exactly 0

    # Diagonal-covariance MVN log_prob(action); constants precomputed host-side.
    d1 = x[:, 0:1] - act[:, 0:1]
    d2 = x[:, 1:2] - act[:, 1:2]
    logp = -0.5 * (d1 * d1 * dist_ref[0] + d2 * d2 * dist_ref[1]) + dist_ref[2]

    out_ref[...] = jnp.where(col == 2, logp, jnp.where(col == 3, value, act))


# ---------------------------------------------------------------------------
# Parameter construction / packing
# ---------------------------------------------------------------------------
def make_params(key, state_dim):
    """PyTorch-Linear-style uniform(-1/sqrt(fan_in), 1/sqrt(fan_in)) init."""
    def linear(k, fan_in, fan_out):
        k1, k2 = jax.random.split(k)
        bound = 1.0 / math.sqrt(fan_in)
        w = jax.random.uniform(k1, (fan_in, fan_out), jnp.float32, -bound, bound)
        b = jax.random.uniform(k2, (1, fan_out), jnp.float32, -bound, bound)
        return [w, b]

    keys = jax.random.split(key, 9)
    params = []
    params += linear(keys[0], state_dim, 64)   # common.0
    params += linear(keys[1], 64, 32)          # common.2
    params += linear(keys[2], 32, 64)          # branch1.0
    params += linear(keys[3], 64, 1)           # branch1.2
    params += linear(keys[4], 32, 64)          # branch2.0
    params += linear(keys[5], 64, 1)           # branch2.2
    params += linear(keys[6], state_dim, 12)   # critic.0
    params += linear(keys[7], 12, 12)          # critic.2
    params += linear(keys[8], 12, 1)           # critic.4
    return params


def pack_params(params, state_dim):
    """Pack the 9 small Linears into four 128-lane block-diagonal bf16 matmuls
    plus a stacked f32 bias/row table.  Unset regions MUST stay zero (see the
    zero-padding invariant at the top of the file)."""
    (cw1, cb1, cw2, cb2, a1w1, a1b1, a1w2, a1b2,
     a2w1, a2b1, a2w2, a2b2, vw1, vb1, vw2, vb2, vw3, vb3) = params
    S = state_dim
    f32 = jnp.float32

    # Layer A: input slab is [action(2) | state(S)]; action rows stay zero.
    WA = (jnp.zeros((S + 2, 128), f32)
          .at[2:2 + S, 0:64].set(cw1)           # actor common.0
          .at[2:2 + S, 64:76].set(vw1))         # critic.0
    bA = jnp.zeros((128,), f32).at[0:64].set(cb1[0]).at[64:76].set(vb1[0])

    WB = (jnp.zeros((128, 128), f32)
          .at[0:64, 0:32].set(cw2)              # actor common.2
          .at[64:76, 32:44].set(vw2))           # critic.2
    bB = jnp.zeros((128,), f32).at[0:32].set(cb2[0]).at[32:44].set(vb2[0])

    WC = (jnp.zeros((128, 128), f32)
          .at[0:32, 0:64].set(a1w1)             # branch1.0
          .at[0:32, 64:128].set(a2w1))          # branch2.0
    bC = jnp.zeros((128,), f32).at[0:64].set(a1b1[0]).at[64:128].set(a2b1[0])

    WD = (jnp.zeros((128, 128), f32)
          .at[0:64, 0:1].set(a1w2)              # branch1.2 -> col 0
          .at[64:128, 1:2].set(a2w2))           # branch2.2 -> col 1
    bD = jnp.zeros((128,), f32).at[0:1].set(a1b2[0]).at[1:2].set(a2b2[0])

    # critic.4 weights as a lane-masked row (value = sum(hb * row) + vb3).
    vrow = jnp.zeros((128,), f32).at[32:44].set(vw3[:, 0])

    WA = WA.astype(jnp.bfloat16)
    WS = jnp.stack([WB, WC, WD]).astype(jnp.bfloat16)   # [3,128,128]
    BS = jnp.stack([bA, bB, bC, bD, vrow])              # [5,128] f32
    return WA, WS, BS


# ---------------------------------------------------------------------------
# Wrapper
# ---------------------------------------------------------------------------
def actor_critic_evaluate(state, action, action_var, params, *, block_b=1024):
    """Pallas-backed ActorCritic.evaluate(state, action).

    Returns (action_mean, logp, value, entropy); action_mean is exactly
    ActorNetwork.forward(state)."""
    B, S = state.shape
    WA, WS, BS = pack_params(params, S)
    vb3 = params[17]                                   # critic.4 bias, shape (1,1)

    # Hoisted distribution constants (A = 2 actions).
    log2pi = math.log(2.0 * math.pi)
    inv_var = (1.0 / action_var).astype(jnp.float32)   # (2,)
    sum_log_var = jnp.sum(jnp.log(action_var))
    logp_const = -log2pi - 0.5 * sum_log_var
    dist = jnp.concatenate([inv_var,
                            jnp.reshape(logp_const, (1,)),
                            jnp.reshape(vb3, (1,))]).astype(jnp.float32)   # (4,)

    # Fused input slab [action | state]; ideally the caller provides this layout
    # directly to avoid the concat copy.
    xin = jnp.concatenate([action, state], axis=-1).astype(jnp.float32)   # [B, 2+S]

    # Batch tiling. No explicit padding: the ragged last block is handled by
    # Pallas' clamped block DMA (OOB reads unspecified, OOB writes discarded).
    block_b = ((block_b + 7) // 8) * 8
    if B <= block_b:
        tb = B
        if B >= 512:                       # v7x megacore: keep >= 2 grid steps
            tb = ((-(-B // 2) + 7) // 8) * 8
    else:
        tb = block_b
    grid = (pl.cdiv(B, tb),)
    # VMEM footprint at tb=1024: ~0.1 MB weights + ~0.15 MB input + ~1 MB output
    # (double-buffered) + intermediates -> well under the 16 MiB v5e scoped
    # default; no vmem_limit_bytes override needed.

    out = pl.pallas_call(
        _actor_critic_kernel,
        out_shape=jax.ShapeDtypeStruct((B, 128), jnp.float32),
        grid_spec=pltpu.PrefetchScalarGridSpec(
            num_scalar_prefetch=1,
            grid=grid,
            in_specs=[
                pl.BlockSpec((tb, S + 2), lambda i, d: (i, 0)),       # fused input
                pl.BlockSpec((S + 2, 128), lambda i, d: (0, 0)),      # WA (resident)
                pl.BlockSpec((3, 128, 128), lambda i, d: (0, 0, 0)),  # WB/WC/WD
                pl.BlockSpec((5, 128), lambda i, d: (0, 0)),          # biases + vrow
            ],
            out_specs=pl.BlockSpec((tb, 128), lambda i, d: (i, 0)),
        ),
        compiler_params=pltpu.CompilerParams(
            dimension_semantics=("parallel",)),
    )(dist, xin, WA, WS, BS)

    action_mean = out[:, 0:2]          # [B, 2]  == ActorNetwork.forward(state)
    logp = out[:, 2]                   # [B]
    value = out[:, 3:4]                # [B, 1]
    # Entropy is batch-independent: built here, not in the kernel.
    ent = jnp.full((B,), 1.0 + log2pi, jnp.float32) + 0.5 * sum_log_var
    return action_mean, logp, value, ent


# ---------------------------------------------------------------------------
# Pure-JAX reference (mirrors the PyTorch forward math)
# ---------------------------------------------------------------------------
def reference_evaluate(state, action, action_var, params):
    (cw1, cb1, cw2, cb2, a1w1, a1b1, a1w2, a1b2,
     a2w1, a2b1, a2w2, a2b2, vw1, vb1, vw2, vb2, vw3, vb3) = params
    relu = lambda z: jnp.maximum(z, 0.0)
    h = relu(state @ cw1 + cb1)
    h = relu(h @ cw2 + cb2)
    m1 = jnp.tanh(relu(h @ a1w1 + a1b1) @ a1w2 + a1b2)
    m2 = jax.nn.sigmoid(relu(h @ a2w1 + a2b1) @ a2w2 + a2b2)
    mean = jnp.concatenate([m1, m2], axis=-1)
    var = action_var[None, :]
    d = action - mean
    log2pi = math.log(2.0 * math.pi)
    A = mean.shape[-1]
    logp = (-0.5 * jnp.sum(d * d / var, axis=-1)
            - 0.5 * A * log2pi - 0.5 * jnp.sum(jnp.log(var), axis=-1))
    ent = 0.5 * A * (1.0 + log2pi) + 0.5 * jnp.sum(jnp.log(action_var))
    ent = jnp.full((state.shape[0],), ent, jnp.float32)
    v = jnp.tanh(state @ vw1 + vb1)
    v = jnp.tanh(v @ vw2 + vb2)
    v = v @ vw3 + vb3
    return mean, logp, v, ent


if __name__ == "__main__":
    # TODO(synk): act() uses dist.sample() (stochastic); only the deterministic
    # forward/evaluate path (networks + log_prob + entropy) is implemented here.
    STATE_DIM, ACTION_DIM = 16, 2
    ACTION_STD_INIT = 0.5

    key = jax.random.PRNGKey(0)
    k_params, _ = jax.random.split(key)
    params = make_params(k_params, STATE_DIM)
    action_var = jnp.full((ACTION_DIM,), ACTION_STD_INIT * ACTION_STD_INIT, jnp.float32)

    def check(B, block_b):
        ks, ka = jax.random.split(jax.random.fold_in(key, B))
        state = jax.random.normal(ks, (B, STATE_DIM), jnp.float32)
        action = jax.random.normal(ka, (B, ACTION_DIM), jnp.float32)
        mean, logp, val, ent = jax.block_until_ready(
            actor_critic_evaluate(state, action, action_var, params, block_b=block_b))
        mean_r, logp_r, val_r, ent_r = reference_evaluate(state, action, action_var, params)
        assert mean.shape == (B, ACTION_DIM) and logp.shape == (B,)
        assert val.shape == (B, 1) and ent.shape == (B,)
        # bf16 MXU operands: mean/value error ~1e-3; logp amplifies mean error
        # by |action-mean|/var (=4 here), hence the slightly looser bound.
        assert jnp.allclose(mean, mean_r, rtol=1e-2, atol=1.5e-2)
        assert jnp.allclose(val, val_r, rtol=1e-2, atol=1.5e-2)
        assert jnp.allclose(logp, logp_r, rtol=2e-2, atol=5e-2)
        assert jnp.allclose(ent, ent_r, rtol=1e-2, atol=1e-2)

    check(B=8, block_b=1024)    # single-block path
    check(B=40, block_b=16)     # multi-step grid + ragged final block path

    print("KERNEL_OK")
</pallas_src>

<mosaic_0001>
module attributes {stable_mosaic.version = 11 : i64} {
  func.func @_actor_critic_kernel(%arg0: i32, %arg1: memref<4xf32, #tpu.memory_space<smem>>, %arg2: memref<8x18xf32, #tpu.memory_space<vmem>>, %arg3: memref<18x128xbf16, #tpu.memory_space<vmem>>, %arg4: memref<3x128x128xbf16, #tpu.memory_space<vmem>>, %arg5: memref<5x128xf32, #tpu.memory_space<vmem>>, %arg6: memref<8x128xf32, #tpu.memory_space<vmem>>) attributes {dimension_semantics = [#tpu.dimension_semantics<parallel>], iteration_bounds = array<i64: 1>, scalar_prefetch = 1 : i64, scratch_operands = 0 : i64, tpu.core_type = #tpu.core_type<tc>, window_params = [{transform_indices = @transform_0, window_bounds = array<i64: 8, 18>}, {pipeline_mode = #tpu.pipeline_mode<synchronous>, transform_indices = @transform_1, window_bounds = array<i64: 18, 128>}, {pipeline_mode = #tpu.pipeline_mode<synchronous>, transform_indices = @transform_2, window_bounds = array<i64: 3, 128, 128>}, {pipeline_mode = #tpu.pipeline_mode<synchronous>, transform_indices = @transform_3, window_bounds = array<i64: 5, 128>}, {transform_indices = @transform_4, window_bounds = array<i64: 8, 128>}]} {
    %0 = tpu.iota {dimensions = array<i32: 1>} : vector<1x128xi32>
    %c0 = arith.constant 0 : index
    %c0_0 = arith.constant 0 : index
    %1 = vector.load %arg2[%c0, %c0_0] : memref<8x18xf32, #tpu.memory_space<vmem>>, vector<8x18xf32>
    %2 = arith.truncf %1 : vector<8x18xf32> to vector<8x18xbf16>
    %c0_1 = arith.constant 0 : index
    %c0_2 = arith.constant 0 : index
    %3 = vector.load %arg3[%c0_1, %c0_2] : memref<18x128xbf16, #tpu.memory_space<vmem>>, vector<18x128xbf16>
    %cst = arith.constant dense<0.000000e+00> : vector<8x128xf32>
    %4 = tpu.matmul %2, %3, %cst {dimension_numbers = #tpu.dot_dimension_numbers<[1], [0], [0], [1], [0, 0, 1, 1], [], []>} : vector<8x18xbf16>, vector<18x128xbf16>, vector<8x128xf32> -> vector<8x128xf32>
    %c0_3 = arith.constant 0 : index
    %c0_4 = arith.constant 0 : index
    %5 = vector.load %arg5[%c0_3, %c0_4] : memref<5x128xf32, #tpu.memory_space<vmem>>, vector<1x128xf32>
    %6 = vector.broadcast %5 : vector<1x128xf32> to vector<8x128xf32>
    %7 = arith.addf %4, %6 : vector<8x128xf32>
    %c64_i32 = arith.constant 64 : i32
    %8 = vector.broadcast %c64_i32 : i32 to vector<1x128xi32>
    %9 = arith.cmpi slt, %0, %8 : vector<1x128xi32>
    %cst_5 = arith.constant 0.000000e+00 : f32
    %10 = vector.broadcast %cst_5 : f32 to vector<8x128xf32>
    %11 = arith.maximumf %7, %10 : vector<8x128xf32>
    %12 = math.tanh %7 : vector<8x128xf32>
    %13 = vector.shape_cast %9 : vector<1x128xi1> to vector<1x128xi1>
    %14 = vector.broadcast %13 : vector<1x128xi1> to vector<8x128xi1>
    %15 = arith.select %14, %11, %12 : vector<8x128xi1>, vector<8x128xf32>
    %16 = arith.truncf %15 : vector<8x128xf32> to vector<8x128xbf16>
    %c0_6 = arith.constant 0 : index
    %c0_7 = arith.constant 0 : index
    %c0_8 = arith.constant 0 : index
    %17 = vector.load %arg4[%c0_6, %c0_7, %c0_8] : memref<3x128x128xbf16, #tpu.memory_space<vmem>>, vector<1x128x128xbf16>
    %18 = vector.shape_cast %17 : vector<1x128x128xbf16> to vector<128x128xbf16>
    %cst_9 = arith.constant dense<0.000000e+00> : vector<8x128xf32>
    %19 = tpu.matmul %16, %18, %cst_9 {dimension_numbers = #tpu.dot_dimension_numbers<[1], [0], [0], [1], [0, 0, 1, 1], [], []>} : vector<8x128xbf16>, vector<128x128xbf16>, vector<8x128xf32> -> vector<8x128xf32>
    %c1 = arith.constant 1 : index
    %c0_10 = arith.constant 0 : index
    %20 = vector.load %arg5[%c1, %c0_10] : memref<5x128xf32, #tpu.memory_space<vmem>>, vector<1x128xf32>
    %21 = vector.broadcast %20 : vector<1x128xf32> to vector<8x128xf32>
    %22 = arith.addf %19, %21 : vector<8x128xf32>
    %c32_i32 = arith.constant 32 : i32
    %23 = vector.broadcast %c32_i32 : i32 to vector<1x128xi32>
    %24 = arith.cmpi slt, %0, %23 : vector<1x128xi32>
    %cst_11 = arith.constant 0.000000e+00 : f32
    %25 = vector.broadcast %cst_11 : f32 to vector<8x128xf32>
    %26 = arith.maximumf %22, %25 : vector<8x128xf32>
    %27 = math.tanh %22 : vector<8x128xf32>
    %28 = vector.shape_cast %24 : vector<1x128xi1> to vector<1x128xi1>
    %29 = vector.broadcast %28 : vector<1x128xi1> to vector<8x128xi1>
    %30 = arith.select %29, %26, %27 : vector<8x128xi1>, vector<8x128xf32>
    %c4 = arith.constant 4 : index
    %c0_12 = arith.constant 0 : index
    %31 = vector.load %arg5[%c4, %c0_12] : memref<5x128xf32, #tpu.memory_space<vmem>>, vector<1x128xf32>
    %32 = vector.broadcast %31 : vector<1x128xf32> to vector<8x128xf32>
    %33 = arith.mulf %30, %32 : vector<8x128xf32>
    %cst_13 = arith.constant dense<0.000000e+00> : vector<8xf32>
    %34 = vector.multi_reduction <add>, %33, %cst_13 [1] : vector<8x128xf32> to vector<8xf32>
    %35 = vector.shape_cast %34 : vector<8xf32> to vector<8x1xf32>
    %c3 = arith.constant 3 : index
    %36 = memref.load %arg1[%c3] : memref<4xf32, #tpu.memory_space<smem>>
    %37 = vector.broadcast %36 : f32 to vector<8x1xf32>
    %38 = arith.addf %35, %37 : vector<8x1xf32>
    %39 = arith.truncf %30 : vector<8x128xf32> to vector<8x128xbf16>
    %c1_14 = arith.constant 1 : index
    %c0_15 = arith.constant 0 : index
    %c0_16 = arith.constant 0 : index
    %40 = vector.load %arg4[%c1_14, %c0_15, %c0_16] : memref<3x128x128xbf16, #tpu.memory_space<vmem>>, vector<1x128x128xbf16>
    %41 = vector.shape_cast %40 : vector<1x128x128xbf16> to vector<128x128xbf16>
    %cst_17 = arith.constant dense<0.000000e+00> : vector<8x128xf32>
    %42 = tpu.matmul %39, %41, %cst_17 {dimension_numbers = #tpu.dot_dimension_numbers<[1], [0], [0], [1], [0, 0, 1, 1], [], []>} : vector<8x128xbf16>, vector<128x128xbf16>, vector<8x128xf32> -> vector<8x128xf32>
    %c2 = arith.constant 2 : index
    %c0_18 = arith.constant 0 : index
    %43 = vector.load %arg5[%c2, %c0_18] : memref<5x128xf32, #tpu.memory_space<vmem>>, vector<1x128xf32>
    %44 = vector.broadcast %43 : vector<1x128xf32> to vector<8x128xf32>
    %45 = arith.addf %42, %44 : vector<8x128xf32>
    %cst_19 = arith.constant 0.000000e+00 : f32
    %46 = vector.broadcast %cst_19 : f32 to vector<8x128xf32>
    %47 = arith.maximumf %45, %46 : vector<8x128xf32>
    %48 = arith.truncf %47 : vector<8x128xf32> to vector<8x128xbf16>
    %c2_20 = arith.constant 2 : index
    %c0_21 = arith.constant 0 : index
    %c0_22 = arith.constant 0 : index
    %49 = vector.load %arg4[%c2_20, %c0_21, %c0_22] : memref<3x128x128xbf16, #tpu.memory_space<vmem>>, vector<1x128x128xbf16>
    %50 = vector.shape_cast %49 : vector<1x128x128xbf16> to vector<128x128xbf16>
    %cst_23 = arith.constant dense<0.000000e+00> : vector<8x128xf32>
    %51 = tpu.matmul %48, %50, %cst_23 {dimension_numbers = #tpu.dot_dimension_numbers<[1], [0], [0], [1], [0, 0, 1, 1], [], []>} : vector<8x128xbf16>, vector<128x128xbf16>, vector<8x128xf32> -> vector<8x128xf32>
    %c3_24 = arith.constant 3 : index
    %c0_25 = arith.constant 0 : index
    %52 = vector.load %arg5[%c3_24, %c0_25] : memref<5x128xf32, #tpu.memory_space<vmem>>, vector<1x128xf32>
    %53 = vector.broadcast %52 : vector<1x128xf32> to vector<8x128xf32>
    %54 = arith.addf %51, %53 : vector<8x128xf32>
    %c1_i32 = arith.constant 1 : i32
    %55 = vector.broadcast %c1_i32 : i32 to vector<1x128xi32>
    %56 = arith.cmpi eq, %0, %55 : vector<1x128xi32>
    %cst_26 = arith.constant 5.000000e-01 : f32
    %cst_27 = arith.constant 1.000000e+00 : f32
    %57 = vector.broadcast %cst_26 : f32 to vector<1x128xf32>
    %58 = vector.broadcast %cst_27 : f32 to vector<1x128xf32>
    %59 = arith.select %56, %57, %58 : vector<1x128xi1>, vector<1x128xf32>
    %60 = vector.broadcast %59 : vector<1x128xf32> to vector<8x128xf32>
    %61 = arith.mulf %54, %60 : vector<8x128xf32>
    %62 = math.tanh %61 : vector<8x128xf32>
    %c1_i32_28 = arith.constant 1 : i32
    %63 = vector.broadcast %c1_i32_28 : i32 to vector<1x128xi32>
    %64 = arith.cmpi eq, %0, %63 : vector<1x128xi32>
    %cst_29 = arith.constant 5.000000e-01 : f32
    %65 = vector.broadcast %cst_29 : f32 to vector<8x128xf32>
    %66 = arith.mulf %65, %62 : vector<8x128xf32>
    %cst_30 = arith.constant 5.000000e-01 : f32
    %67 = vector.broadcast %cst_30 : f32 to vector<8x128xf32>
    %68 = arith.addf %67, %66 : vector<8x128xf32>
    %69 = vector.shape_cast %64 : vector<1x128xi1> to vector<1x128xi1>
    %70 = vector.broadcast %69 : vector<1x128xi1> to vector<8x128xi1>
    %71 = arith.select %70, %68, %62 : vector<8x128xi1>, vector<8x128xf32>
    %72 = vector.extract_strided_slice %1 {offsets = [0, 0], sizes = [8, 1], strides = [1, 1]} : vector<8x18xf32> to vector<8x1xf32>
    %73 = vector.extract_strided_slice %71 {offsets = [0, 0], sizes = [8, 1], strides = [1, 1]} : vector<8x128xf32> to vector<8x1xf32>
    %74 = arith.subf %72, %73 : vector<8x1xf32>
    %75 = vector.extract_strided_slice %1 {offsets = [0, 1], sizes = [8, 1], strides = [1, 1]} : vector<8x18xf32> to vector<8x1xf32>
    %76 = vector.extract_strided_slice %71 {offsets = [0, 1], sizes = [8, 1], strides = [1, 1]} : vector<8x128xf32> to vector<8x1xf32>
    %77 = arith.subf %75, %76 : vector<8x1xf32>
    %78 = arith.mulf %74, %74 : vector<8x1xf32>
    %c0_31 = arith.constant 0 : index
    %79 = memref.load %arg1[%c0_31] : memref<4xf32, #tpu.memory_space<smem>>
    %80 = vector.broadcast %79 : f32 to vector<8x1xf32>
    %81 = arith.mulf %78, %80 : vector<8x1xf32>
    %82 = arith.mulf %77, %77 : vector<8x1xf32>
    %c1_32 = arith.constant 1 : index
    %83 = memref.load %arg1[%c1_32] : memref<4xf32, #tpu.memory_space<smem>>
    %84 = vector.broadcast %83 : f32 to vector<8x1xf32>
    %85 = arith.mulf %82, %84 : vector<8x1xf32>
    %86 = arith.addf %81, %85 : vector<8x1xf32>
    %cst_33 = arith.constant -5.000000e-01 : f32
    %87 = vector.broadcast %cst_33 : f32 to vector<8x1xf32>
    %88 = arith.mulf %87, %86 : vector<8x1xf32>
    %c2_34 = arith.constant 2 : index
    %89 = memref.load %arg1[%c2_34] : memref<4xf32, #tpu.memory_space<smem>>
    %90 = vector.broadcast %89 : f32 to vector<8x1xf32>
    %91 = arith.addf %88, %90 : vector<8x1xf32>
    %c2_i32 = arith.constant 2 : i32
    %92 = vector.broadcast %c2_i32 : i32 to vector<1x128xi32>
    %93 = arith.cmpi eq, %0, %92 : vector<1x128xi32>
    %c3_i32 = arith.constant 3 : i32
    %94 = vector.broadcast %c3_i32 : i32 to vector<1x128xi32>
    %95 = arith.cmpi eq, %0, %94 : vector<1x128xi32>
    %96 = vector.shape_cast %95 : vector<1x128xi1> to vector<1x128xi1>
    %97 = vector.broadcast %96 : vector<1x128xi1> to vector<8x128xi1>
    %98 = vector.shape_cast %38 : vector<8x1xf32> to vector<8x1xf32>
    %99 = vector.broadcast %98 : vector<8x1xf32> to vector<8x128xf32>
    %100 = arith.select %97, %99, %71 : vector<8x128xi1>, vector<8x128xf32>
    %101 = vector.shape_cast %93 : vector<1x128xi1> to vector<1x128xi1>
    %102 = vector.broadcast %101 : vector<1x128xi1> to vector<8x128xi1>
    %103 = vector.shape_cast %91 : vector<8x1xf32> to vector<8x1xf32>
    %104 = vector.broadcast %103 : vector<8x1xf32> to vector<8x128xf32>
    %105 = arith.select %102, %104, %100 : vector<8x128xi1>, vector<8x128xf32>
    %c0_35 = arith.constant 0 : index
    %c0_36 = arith.constant 0 : index
    %106 = vector.load %arg6[%c0_35, %c0_36] : memref<8x128xf32, #tpu.memory_space<vmem>>, vector<8x128xf32>
    tpu.vector_store %arg6[%c0_35, %c0_36], %105 {strides = array<i32>} : memref<8x128xf32, #tpu.memory_space<vmem>>, vector<8x128xf32>,
    return
  }
  func.func @transform_0(%arg0: i32, %arg1: memref<4xf32, #tpu.memory_space<smem>>) -> (i32, i32) {
    %c0_i32 = arith.constant 0 : i32
    %c0_i32_0 = arith.constant 0 : i32
    return %arg0, %c0_i32 : i32, i32
  }
  func.func @transform_1(%arg0: i32, %arg1: memref<4xf32, #tpu.memory_space<smem>>) -> (i32, i32) {
    %c0_i32 = arith.constant 0 : i32
    %c0_i32_0 = arith.constant 0 : i32
    %c0_i32_1 = arith.constant 0 : i32
    return %c0_i32, %c0_i32_0 : i32, i32
  }
  func.func @transform_2(%arg0: i32, %arg1: memref<4xf32, #tpu.memory_space<smem>>) -> (i32, i32, i32) {
    %c0_i32 = arith.constant 0 : i32
    %c0_i32_0 = arith.constant 0 : i32
    %c0_i32_1 = arith.constant 0 : i32
    %c0_i32_2 = arith.constant 0 : i32
    return %c0_i32, %c0_i32_0, %c0_i32_1 : i32, i32, i32
  }
  func.func @transform_3(%arg0: i32, %arg1: memref<4xf32, #tpu.memory_space<smem>>) -> (i32, i32) {
    %c0_i32 = arith.constant 0 : i32
    %c0_i32_0 = arith.constant 0 : i32
    %c0_i32_1 = arith.constant 0 : i32
    return %c0_i32, %c0_i32_0 : i32, i32
  }
  func.func @transform_4(%arg0: i32, %arg1: memref<4xf32, #tpu.memory_space<smem>>) -> (i32, i32) {
    %c0_i32 = arith.constant 0 : i32
    %c0_i32_0 = arith.constant 0 : i32
    return %arg0, %c0_i32 : i32, i32
  }
}

</mosaic_0001>

<llo_original>
// kernel: tpu_custom_call.1
$region0: #{tpu_custom_call.1}
  #allocation0 [shape = 'u32[]', space=smem, size = 0x4, offset = 0x4, fixed_abs, tag = 'smem constant byte address 0x4 - core index']
  #allocation1 [shape = 'u32[72,128]{1,0:T(1,128)}', space=vmem, size = 0x9000, scoped, tag = 'internal scratch']
  #allocation2 [shape = 's32[1]{0}', space=sflag, size = 0x4, scoped, tag = 'scoped memory for tpu_custom_call.1']
  #allocation3 [shape = 'u8[512]{0}', space=smem, size = 0x200, scoped, tag = 'prefetched SMEM operand 0']
  %s0 = inlined_call_operand.hbm [shape: f32[4], index: 0, kind: input, shape index: {}]
  %s1 = inlined_call_operand.hbm [shape: f32[8,18], index: 1, kind: input, shape index: {}]
  %s2 = inlined_call_operand.hbm [shape: bf16[18,128], index: 2, kind: input, shape index: {}]
  %s3 = inlined_call_operand.hbm [shape: bf16[3,128,128], index: 3, kind: input, shape index: {}]
  %s4 = inlined_call_operand.hbm [shape: f32[5,128], index: 4, kind: input, shape index: {}]
  %s5 = inlined_call_operand.hbm [shape: f32[8,128], index: 5, kind: output, shape index: {}]
  %s6 = sld [smem:[#allocation0]]
  $region42: #{tpu_custom_call.1} parent=0
    _
  %s8 = ssub.s32 1, %s6
  %s9 = scalar_select 0, %s8, %s6
  %s11 = sshll.u32 %s0, 4
  %s12 = int_to_ptr.hbm [resolvable:$true] %s11
  %14 = dma.hbm_to_smem %s12, 16, [#allocation3], [#allocation2]
  %16 = dma.done [#allocation2], 16
  %17 = sfence
  $region1: #{tpu_custom_call.1} parent=0
    #allocation4 [shape = 'u8[4096]{0}', space=vmem, size = 0x1000, scoped, tag = 'input window, operand 1, single buffered']
    #allocation5 [shape = 's32[1]{0}', space=sflag, size = 0x4, scoped, tag = 'scoped memory for tpu_custom_call.1']
    #allocation6 [shape = 's32[1]{0}', space=sflag, size = 0x4, scoped, tag = 'scoped memory for tpu_custom_call.1']
    #allocation7 [shape = 'u8[6144]{0}', space=vmem, size = 0x1800, scoped, tag = 'input window, operand 2, single buffered']
    #allocation8 [shape = 's32[1]{0}', space=sflag, size = 0x4, scoped, tag = 'scoped memory for tpu_custom_call.1']
    #allocation9 [shape = 'u8[98304]{0}', space=vmem, size = 0x18000, scoped, tag = 'input window, operand 3, single buffered']
    #allocation10 [shape = 'u8[4096]{0}', space=vmem, size = 0x1000, scoped, tag = 'input window, operand 4, single buffered']
    #allocation11 [shape = 's32[1]{0}', space=sflag, size = 0x4, scoped, tag = 'scoped memory for tpu_custom_call.1']
    #allocation12 [shape = 'u8[4096]{0}', space=vmem, size = 0x1000, scoped, tag = 'output window, operand 0, single buffered']
    %18 = vsyncpa [#allocation5], 0
    %19 = vsyncpa [#allocation8], 0
    %20 = vsyncpa [#allocation11], 0
    %21 = vsyncpa [#allocation6], 0
    // Predicated region
    $region2: #{tpu_custom_call.1} parent=1 // pred_check
      _
    $region3: #{tpu_custom_call.1} parent=1 // pred_check_branch
      %23 = sbr.rel (0) target = $region5
    $region4: #{tpu_custom_call.1} parent=1 // pred_region
      %25 = vsyncadd [#allocation5], 0
      %s27 = sshll.u32 %s1, 4
      %s28 = int_to_ptr.hbm [resolvable:$true] %s27
      %s29 = sshll.u32 [#allocation4], 4
      %s30 = int_to_ptr.vmem [resolvable:$true] %s29
      %32 = dma.hbm_to_vmem [thread:$0]  %s28, 128, %s30, [#allocation5]
    $region5: #{tpu_custom_call.1} parent=1 // pred_fallthru
      _
    // Predicated region
    $region6: #{tpu_custom_call.1} parent=1 // pred_check
      _
    $region7: #{tpu_custom_call.1} parent=1 // pred_check_branch
      %34 = sbr.rel (0) target = $region9
    $region8: #{tpu_custom_call.1} parent=1 // pred_region
      %36 = vsyncadd [#allocation8], 0
      %s37 = sshll.u32 %s2, 4
      %s38 = int_to_ptr.hbm [resolvable:$true] %s37
      %s39 = sshll.u32 [#allocation7], 4
      %s40 = int_to_ptr.vmem [resolvable:$true] %s39
      %45 = dma.hbm_to_vmem [thread:$0]  %s38, 192, %s40, [#allocation8], 64, 64, 4
    $region9: #{tpu_custom_call.1} parent=1 // pred_fallthru
      _
    // Predicated region
    $region10: #{tpu_custom_call.1} parent=1 // pred_check
      _
    $region11: #{tpu_custom_call.1} parent=1 // pred_check_branch
      %47 = sbr.rel (0) target = $region13
    $region12: #{tpu_custom_call.1} parent=1 // pred_region
      %49 = vsyncadd [#allocation8], 0
      %s50 = sshll.u32 %s3, 4
      %s51 = int_to_ptr.hbm [resolvable:$true] %s50
      %s52 = sshll.u32 [#allocation9], 4
      %s53 = int_to_ptr.vmem [resolvable:$true] %s52
      %58 = dma.hbm_to_vmem [thread:$0]  %s51, 3072, %s53, [#allocation8], 64, 64, 4
    $region13: #{tpu_custom_call.1} parent=1 // pred_fallthru
      _
    // Predicated region
    $region14: #{tpu_custom_call.1} parent=1 // pred_check
      _
    $region15: #{tpu_custom_call.1} parent=1 // pred_check_branch
      %60 = sbr.rel (0) target = $region17
    $region16: #{tpu_custom_call.1} parent=1 // pred_region
      %62 = vsyncadd [#allocation11], 0
      %s64 = sshll.u32 %s4, 4
      %s65 = int_to_ptr.hbm [resolvable:$true] %s64
      %s66 = sshll.u32 [#allocation10], 4
      %s67 = int_to_ptr.vmem [resolvable:$true] %s66
      %69 = dma.hbm_to_vmem [thread:$0]  %s65, 128, %s67, [#allocation11]
    $region17: #{tpu_custom_call.1} parent=1 // pred_fallthru
      _
    // Predicated region
    $region18: #{tpu_custom_call.1} parent=1 // pred_check
      _
    $region19: #{tpu_custom_call.1} parent=1 // pred_check_branch
      %71 = sbr.rel (0) target = $region21
    $region20: #{tpu_custom_call.1} parent=1 // pred_region
      %73 = dma.done [#allocation5], 128
    $region21: #{tpu_custom_call.1} parent=1 // pred_fallthru
      _
    // Predicated region
    $region22: #{tpu_custom_call.1} parent=1 // pred_check
      _
    $region23: #{tpu_custom_call.1} parent=1 // pred_check_branch
      %75 = sbr.rel (0) target = $region25
    $region24: #{tpu_custom_call.1} parent=1 // pred_region
      %77 = dma.done [#allocation8], 192
    $region25: #{tpu_custom_call.1} parent=1 // pred_fallthru
      _
    // Predicated region
    $region26: #{tpu_custom_call.1} parent=1 // pred_check
      _
    $region27: #{tpu_custom_call.1} parent=1 // pred_check_branch
      %79 = sbr.rel (0) target = $region29
    $region28: #{tpu_custom_call.1} parent=1 // pred_region
      %81 = dma.done [#allocation8], 3072
    $region29: #{tpu_custom_call.1} parent=1 // pred_fallthru
      _
    // Predicated region
    $region30: #{tpu_custom_call.1} parent=1 // pred_check
      _
    $region31: #{tpu_custom_call.1} parent=1 // pred_check_branch
      %83 = sbr.rel (0) target = $region33
    $region32: #{tpu_custom_call.1} parent=1 // pred_region
      %85 = dma.done [#allocation11], 128
    $region33: #{tpu_custom_call.1} parent=1 // pred_fallthru
      _
    %v87 = vlaneseq
    %v88 = vand.u32 %v87, 127
    %v89 = vld [vmem:[#allocation4] sm:$0xff]
    %v90 = vpack.c.bf16 %v89, %v89
    %v91 = vld [vmem:[#allocation7] sm:$0xf]
    %v92 = vld [vmem:[#allocation7 + $0x4] sm:$0xf]
    %v93 = vld [vmem:[#allocation7 + $0x8] sm:$0x1]
    %v94 = vld [vmem:[#allocation10] sm:$0x1]
    %v95 = vperm.slane %v94, 0
    %v99 = vunpack.c.l.b16 %v91
    %v100 = vunpack.c.l.b16 %v92
    %v101 = vunpack.c.l.b16 %v93
    %v102 = vpack.c.b16 %v100, %v99
    %v103 = vpack.c.b16 %v101, %v101
    %vm105 = vcmask 146432
    %v107 = vsel %vm105, %v90, 0
    %vm109 = vcmask 1040384
    %v111 = vsel %vm109, %v103, 0
    %113 = vmatpush.bf16.msra.mxu0 0
    %114 = vmatpush.bf16.msra.mxu0 0
    %115 = vmatpush.bf16.msra.mxu0 0
    %116 = vmatpush.bf16.msra.mxu0 0
    %117 = vmatpush.bf16.msra.mxu0 0
    %118 = vmatpush.bf16.msra.mxu0 0
    %119 = vmatpush.bf16.msra.mxu0 %v111
    %120 = vmatpush.bf16.msra.mxu0 %v102
    %121 = vmatmul.bf16.gmra.mxu0 %v107
    %v122 = vpop.f32.mrf.mxu0
    %v123 = vadd.f32 %v95, %v122
    %v124 = vpop.f32.mrf.mxu0
    %125 = vdwg.mxu0
    %vm126 = vcmp.lt.s32.totalorder %v88, 64
    %v127 = vmax.f32 %v123, 0.0
    %v128 = vtanh.pop %v123
    %v129 = vsel %vm126, 1, 0
    %vm130 = vcmp.eq.s32.totalorder %v129, 1
    %v131 = vsel %vm130, %v127, %v128
    %v132 = vpack.c.bf16 %v131, %v131
    %v133 = vld [vmem:[#allocation9] sm:$0xf]
    %v134 = vld [vmem:[#allocation9 + $0x4] sm:$0xf]
    %v135 = vld [vmem:[#allocation9 + $0x8] sm:$0xf]
    %v136 = vld [vmem:[#allocation9 + $0xc] sm:$0xf]
    %v137 = vld [vmem:[#allocation9 + $0x10] sm:$0xf]
    %v138 = vld [vmem:[#allocation9 + $0x14] sm:$0xf]
    %v139 = vld [vmem:[#allocation9 + $0x18] sm:$0xf]
    %v140 = vld [vmem:[#allocation9 + $0x1c] sm:$0xf]
    %v141 = vld [vmem:[#allocation9 + $0x20] sm:$0xf]
    %v142 = vld [vmem:[#allocation9 + $0x24] sm:$0xf]
    %v143 = vld [vmem:[#allocation9 + $0x28] sm:$0xf]
    %v144 = vld [vmem:[#allocation9 + $0x2c] sm:$0xf]
    %v145 = vld [vmem:[#allocation9 + $0x30] sm:$0xf]
    %v146 = vld [vmem:[#allocation9 + $0x34] sm:$0xf]
    %v147 = vld [vmem:[#allocation9 + $0x38] sm:$0xf]
    %v148 = vld [vmem:[#allocation9 + $0x3c] sm:$0xf]
    %v149 = vld [vmem:[#allocation10 + $0x1] sm:$0x1]
    %v150 = vperm.slane %v149, 0
    %v167 = vunpack.c.l.b16 %v133
    %v168 = vunpack.c.l.b16 %v134
    %v169 = vunpack.c.l.b16 %v135
    %v170 = vunpack.c.l.b16 %v136
    %v171 = vunpack.c.l.b16 %v137
    %v172 = vunpack.c.l.b16 %v138
    %v173 = vunpack.c.l.b16 %v139
    %v174 = vunpack.c.l.b16 %v140
    %v175 = vunpack.c.l.b16 %v141
    %v176 = vunpack.c.l.b16 %v142
    %v177 = vunpack.c.l.b16 %v143
    %v178 = vunpack.c.l.b16 %v144
    %v179 = vunpack.c.l.b16 %v145
    %v180 = vunpack.c.l.b16 %v146
    %v181 = vunpack.c.l.b16 %v147
    %v182 = vunpack.c.l.b16 %v148
    %v183 = vpack.c.b16 %v168, %v167
    %v184 = vpack.c.b16 %v170, %v169
    %v185 = vpack.c.b16 %v172, %v171
    %v186 = vpack.c.b16 %v174, %v173
    %v187 = vpack.c.b16 %v176, %v175
    %v188 = vpack.c.b16 %v178, %v177
    %v189 = vpack.c.b16 %v180, %v179
    %v190 = vpack.c.b16 %v182, %v181
    %199 = vmatpush.bf16.msra.mxu0 %v190
    %200 = vmatpush.bf16.msra.mxu0 %v189
    %201 = vmatpush.bf16.msra.mxu0 %v188
    %202 = vmatpush.bf16.msra.mxu0 %v187
    %203 = vmatpush.bf16.msra.mxu0 %v186
    %204 = vmatpush.bf16.msra.mxu0 %v185
    %205 = vmatpush.bf16.msra.mxu0 %v184
    %206 = vmatpush.bf16.msra.mxu0 %v183
    %207 = vmatmul.bf16.gmra.mxu0 %v132
    %v208 = vpop.f32.mrf.mxu0
    %v209 = vadd.f32 %v150, %v208
    %v210 = vpop.f32.mrf.mxu0
    %211 = vdwg.mxu0
    %vm212 = vcmp.lt.s32.totalorder %v88, 32
    %v213 = vmax.f32 %v209, 0.0
    %v214 = vtanh.pop %v209
    %v215 = vsel %vm212, 1, 0
    %vm216 = vcmp.eq.s32.totalorder %v215, 1
    %v217 = vsel %vm216, %v213, %v214
    %v218 = vld [vmem:[#allocation10 + $0x4] sm:$0x1]
    %v219 = vperm.slane %v218, 0
    %v220 = vmul.f32 %v217, %v219
    %221 = vadd.xlane.f32.xlu0 %v220
    %v222 = vpop.xlane.xlu0 %221
    %s223 = sld [smem:[#allocation3 + $0x3]]
    %v224 = vstv %s223
    %v225 = vadd.f32 %v222, %v224
    %v226 = vpack.c.bf16 %v217, %v217
    %s227 = scalar_lea.vmem [#allocation9], 64
    %v228 = vld [vmem:[%s227] sm:$0xf]
    %v229 = vld [vmem:[%s227 + $0x4] sm:$0xf]
    %v230 = vld [vmem:[%s227 + $0x8] sm:$0xf]
    %v231 = vld [vmem:[%s227 + $0xc] sm:$0xf]
    %v232 = vld [vmem:[%s227 + $0x10] sm:$0xf]
    %v233 = vld [vmem:[%s227 + $0x14] sm:$0xf]
    %v234 = vld [vmem:[%s227 + $0x18] sm:$0xf]
    %v235 = vld [vmem:[%s227 + $0x1c] sm:$0xf]
    %v236 = vld [vmem:[%s227 + $0x20] sm:$0xf]
    %v237 = vld [vmem:[%s227 + $0x24] sm:$0xf]
    %v238 = vld [vmem:[%s227 + $0x28] sm:$0xf]
    %v239 = vld [vmem:[%s227 + $0x2c] sm:$0xf]
    %v240 = vld [vmem:[%s227 + $0x30] sm:$0xf]
    %v241 = vld [vmem:[%s227 + $0x34] sm:$0xf]
    %v242 = vld [vmem:[%s227 + $0x38] sm:$0xf]
    %v243 = vld [vmem:[%s227 + $0x3c] sm:$0xf]
    %v244 = vld [vmem:[#allocation10 + $0x2] sm:$0x1]
    %v245 = vperm.slane %v244, 0
    %v262 = vunpack.c.l.b16 %v228
    %v263 = vunpack.c.l.b16 %v229
    %v264 = vunpack.c.l.b16 %v230
    %v265 = vunpack.c.l.b16 %v231
    %v266 = vunpack.c.l.b16 %v232
    %v267 = vunpack.c.l.b16 %v233
    %v268 = vunpack.c.l.b16 %v234
    %v269 = vunpack.c.l.b16 %v235
    %v270 = vunpack.c.l.b16 %v236
    %v271 = vunpack.c.l.b16 %v237
    %v272 = vunpack.c.l.b16 %v238
    %v273 = vunpack.c.l.b16 %v239
    %v274 = vunpack.c.l.b16 %v240
    %v275 = vunpack.c.l.b16 %v241
    %v276 = vunpack.c.l.b16 %v242
    %v277 = vunpack.c.l.b16 %v243
    %v278 = vpack.c.b16 %v263, %v262
    %v279 = vpack.c.b16 %v265, %v264
    %v280 = vpack.c.b16 %v267, %v266
    %v281 = vpack.c.b16 %v269, %v268
    %v282 = vpack.c.b16 %v271, %v270
    %v283 = vpack.c.b16 %v273, %v272
    %v284 = vpack.c.b16 %v275, %v274
    %v285 = vpack.c.b16 %v277, %v276
    %294 = vmatpush.bf16.msra.mxu0 %v285
    %295 = vmatpush.bf16.msra.mxu0 %v284
    %296 = vmatpush.bf16.msra.mxu0 %v283
    %297 = vmatpush.bf16.msra.mxu0 %v282
    %298 = vmatpush.bf16.msra.mxu0 %v281
    %299 = vmatpush.bf16.msra.mxu0 %v280
    %300 = vmatpush.bf16.msra.mxu0 %v279
    %301 = vmatpush.bf16.msra.mxu0 %v278
    %302 = vmatmul.bf16.gmra.mxu0 %v226
    %v303 = vpop.f32.mrf.mxu0
    %v304 = vadd.f32 %v245, %v303
    %v305 = vpop.f32.mrf.mxu0
    %306 = vdwg.mxu0
    %v307 = vmax.f32 %v304, 0.0
    %v308 = vpack.c.bf16 %v307, %v307
    %s309 = scalar_lea.vmem [#allocation9], 128
    %v310 = vld [vmem:[%s309] sm:$0xf]
    %v311 = vld [vmem:[%s309 + $0x4] sm:$0xf]
    %v312 = vld [vmem:[%s309 + $0x8] sm:$0xf]
    %v313 = vld [vmem:[%s309 + $0xc] sm:$0xf]
    %v314 = vld [vmem:[%s309 + $0x10] sm:$0xf]
    %v315 = vld [vmem:[%s309 + $0x14] sm:$0xf]
    %v316 = vld [vmem:[%s309 + $0x18] sm:$0xf]
    %v317 = vld [vmem:[%s309 + $0x1c] sm:$0xf]
    %v318 = vld [vmem:[%s309 + $0x20] sm:$0xf]
    %v319 = vld [vmem:[%s309 + $0x24] sm:$0xf]
    %v320 = vld [vmem:[%s309 + $0x28] sm:$0xf]
    %v321 = vld [vmem:[%s309 + $0x2c] sm:$0xf]
    %v322 = vld [vmem:[%s309 + $0x30] sm:$0xf]
    %v323 = vld [vmem:[%s309 + $0x34] sm:$0xf]
    %v324 = vld [vmem:[%s309 + $0x38] sm:$0xf]
    %v325 = vld [vmem:[%s309 + $0x3c] sm:$0xf]
    %v326 = vld [vmem:[#allocation10 + $0x3] sm:$0x1]
    %v327 = vperm.slane %v326, 0
    %v344 = vunpack.c.l.b16 %v310
    %v345 = vunpack.c.l.b16 %v311
    %v346 = vunpack.c.l.b16 %v312
    %v347 = vunpack.c.l.b16 %v313
    %v348 = vunpack.c.l.b16 %v314
    %v349 = vunpack.c.l.b16 %v315
    %v350 = vunpack.c.l.b16 %v316
    %v351 = vunpack.c.l.b16 %v317
    %v352 = vunpack.c.l.b16 %v318
    %v353 = vunpack.c.l.b16 %v319
    %v354 = vunpack.c.l.b16 %v320
    %v355 = vunpack.c.l.b16 %v321
    %v356 = vunpack.c.l.b16 %v322
    %v357 = vunpack.c.l.b16 %v323
    %v358 = vunpack.c.l.b16 %v324
    %v359 = vunpack.c.l.b16 %v325
    %v360 = vpack.c.b16 %v345, %v344
    %v361 = vpack.c.b16 %v347, %v346
    %v362 = vpack.c.b16 %v349, %v348
    %v363 = vpack.c.b16 %v351, %v350
    %v364 = vpack.c.b16 %v353, %v352
    %v365 = vpack.c.b16 %v355, %v354
    %v366 = vpack.c.b16 %v357, %v356
    %v367 = vpack.c.b16 %v359, %v358
    %376 = vmatpush.bf16.msra.mxu0 %v367
    %377 = vmatpush.bf16.msra.mxu0 %v366
    %378 = vmatpush.bf16.msra.mxu0 %v365
    %379 = vmatpush.bf16.msra.mxu0 %v364
    %380 = vmatpush.bf16.msra.mxu0 %v363
    %381 = vmatpush.bf16.msra.mxu0 %v362
    %382 = vmatpush.bf16.msra.mxu0 %v361
    %383 = vmatpush.bf16.msra.mxu0 %v360
    %384 = vmatmul.bf16.gmra.mxu0 %v308
    %v385 = vpop.f32.mrf.mxu0
    %v386 = vadd.f32 %v327, %v385
    %v387 = vpop.f32.mrf.mxu0
    %388 = vdwg.mxu0
    %vm389 = vcmp.eq.s32.totalorder %v88, 1
    %v390 = vsel %vm389, 0.5, 1.0
    %v391 = vmul.f32 %v386, %v390
    %v392 = vtanh.pop %v391
    %v393 = vmul.f32 %v392, 0.5
    %v394 = vadd.f32 %v393, 0.5
    %v395 = vsel %vm389, 1, 0
    %vm396 = vcmp.eq.s32.totalorder %v395, 1
    %v397 = vsel %vm396, %v394, %v392
    %v398 = vsub.f32 %v89, %v397
    %v399 = vmul.f32 %v398, %v398
    %s400 = sld [smem:[#allocation3]]
    %v401 = vstv %s400
    %v402 = vmul.f32 %v399, %v401
    %s403 = sld [smem:[#allocation3 + $0x1]]
    %v404 = vstv %s403
    %v405 = vmul.f32 %v399, %v404
    %407 = vrot.lane.b32.xlu0 %v405, 127
    %v408 = vpop.permute.xlu0 %407
    %v410 = vadd.f32 %v402, %v408
    %v411 = vmul.f32 %v410, -0.5
    %s412 = sld [smem:[#allocation3 + $0x2]]
    %v413 = vstv %s412
    %v414 = vadd.f32 %v411, %v413
    %vm415 = vcmp.eq.s32.totalorder %v88, 2
    %vm416 = vcmp.eq.s32.totalorder %v88, 3
    %v417 = vsel %vm416, 1, 0
    %vm418 = vcmp.eq.s32.totalorder %v417, 1
    %v419 = vsel %vm418, %v225, %v397
    %v420 = vsel %vm415, 1, 0
    %vm421 = vcmp.eq.s32.totalorder %v420, 1
    %423 = vset.pattern.permute.xlu0 0
    %424 = vperm.xlu0 %423, %v414
    %v425 = vpop.permute.xlu0 %424
    %v427 = vsel %vm421, %v425, %v419
    %428 = vst [vmem:[#allocation12] sm:$0xff] %v427
    // Predicated region
    $region34: #{tpu_custom_call.1} parent=1 // pred_check
      _
    $region35: #{tpu_custom_call.1} parent=1 // pred_check_branch
      %430 = sbr.rel (0) target = $region37
    $region36: #{tpu_custom_call.1} parent=1 // pred_region
      %432 = vsyncadd [#allocation6], 0
      %s434 = sshll.u32 [#allocation12], 4
      %s435 = int_to_ptr.vmem [resolvable:$true] %s434
      %s436 = sshll.u32 %s5, 4
      %s437 = int_to_ptr.hbm [resolvable:$true] %s436
      %439 = dma.vmem_to_hbm [thread:$0]  %s435, 128, %s437, [#allocation6]
    $region37: #{tpu_custom_call.1} parent=1 // pred_fallthru
      _
    // Predicated region
    $region38: #{tpu_custom_call.1} parent=1 // pred_check
      _
    $region39: #{tpu_custom_call.1} parent=1 // pred_check_branch
      %441 = sbr.rel (0) target = $region41
    $region40: #{tpu_custom_call.1} parent=1 // pred_region
      %443 = dma.done [#allocation6], 128
    $region41: #{tpu_custom_call.1} parent=1 // pred_fallthru
      _
    %444 = vsyncpa [#allocation5], 1
    %445 = vsyncpa [#allocation8], 1
    %446 = vsyncpa [#allocation11], 1
    %447 = vsyncpa [#allocation6], 1

</llo_original>
